<compile_context>
chip_gen: v7x
topology: tpu7x:2x2x1
jax: 0.10.0
libtpu: 0.0.40
codegen_flags: <defaults>
</compile_context>

<pallas_src>
import functools

import jax
import jax.numpy as jnp
from jax import lax
from jax.experimental import pallas as pl
from jax.experimental.pallas import tpu as pltpu


def _round_up(x, m):
    return (x + m - 1) // m * m


# ---------------------------------------------------------------------------
# Fused decoder kernel: 3 x (3x3 conv, bias=False -> ReLU) on one image.
# Layout inside the kernel: (channels, flat padded spatial), spatial on lanes.
# ---------------------------------------------------------------------------
def _decode_kernel(x_ref, w1_ref, w2_ref, w3_ref, mask_ref, out_ref,
                   act1_ref, act2_ref, *, k, dil, pad, Wp, Lpp, head, Ltot):
    """
    x_ref    : (Cin,  Ltot) bf16   zero-padded flat input plane (image at [head:head+Lp])
    w*_ref   : (Cout, k*k*Csrc) bf16  im2col weights, tap-major / channel-minor K
    mask_ref : (1, Lpp) f32        1.0 at valid (interior) pixels, 0 on pad ring/tail
    out_ref  : (Cout, Lpp) f32     layer-3 output on the lane-padded flat grid
    act*_ref : (Cout, Ltot) bf16   VMEM ping-pong activations
    """
    mask = mask_ref[...]                                     # (1, Lpp) f32

    # Zero the halo columns of the activation scratch (never written below) so
    # layer-2/3 tap reads are well defined (results land only in masked
    # positions, but must not be stale-VMEM garbage / NaN).
    tail = Ltot - head - Lpp
    for act in (act1_ref, act2_ref):
        act[:, :head] = jnp.zeros((act.shape[0], head), act.dtype)
        act[:, head + Lpp:] = jnp.zeros((act.shape[0], tail), act.dtype)

    def conv_relu(src_ref, w_ref):
        # im2col: one shifted lane-slice per tap, stacked along K, then a single
        # MXU contraction (Cout, K) @ (K, Lpp) with f32 accumulation.
        slabs = []
        for dy in range(k):
            for dx in range(k):
                off = head + (dy * dil - pad) * Wp + (dx * dil - pad)  # static
                slabs.append(src_ref[:, off:off + Lpp])
        patches = jnp.concatenate(slabs, axis=0)             # (k*k*Csrc, Lpp) bf16
        y = jnp.dot(w_ref[...], patches,
                    preferred_element_type=jnp.float32)      # (Cout, Lpp) f32
        return jnp.maximum(y, 0.0) * mask                    # masked ReLU (VPU mul)

    # layer 1: concat(x_big, upsample(x)) -> act1
    y = conv_relu(x_ref, w1_ref)
    act1_ref[:, head:head + Lpp] = y.astype(act1_ref.dtype)
    # layer 2: act1 -> act2
    y = conv_relu(act1_ref, w2_ref)
    act2_ref[:, head:head + Lpp] = y.astype(act2_ref.dtype)
    # layer 3: act2 -> out (lane-dense, full-width store)
    out_ref[...] = conv_relu(act2_ref, w3_ref).astype(out_ref.dtype)


# ---------------------------------------------------------------------------
# Bilinear upsample (PyTorch F.upsample(mode='bilinear'), align_corners=False)
# NOTE: very old PyTorch versions defaulted to align_corners=True behaviour;
#       verify against the original checkpoint's PyTorch version if needed.
# ---------------------------------------------------------------------------
def _bilinear_matrix(in_size, out_size, align_corners=False):
    o = jnp.arange(out_size, dtype=jnp.float32)
    if align_corners and out_size > 1:
        src = o * ((in_size - 1) / (out_size - 1))
    else:
        src = (o + 0.5) * (in_size / out_size) - 0.5
    x0 = jnp.floor(src)
    frac = src - x0
    i0 = jnp.clip(x0, 0, in_size - 1).astype(jnp.int32)
    i1 = jnp.clip(x0 + 1, 0, in_size - 1).astype(jnp.int32)
    m = jnp.zeros((out_size, in_size), jnp.float32)
    rows = jnp.arange(out_size)
    m = m.at[rows, i0].add(1.0 - frac)
    m = m.at[rows, i1].add(frac)
    return m


def bilinear_upsample(x, H, W, align_corners=False):
    """(N,C,h,w) -> (N,C,H,W) separable bilinear interpolation (plain-JAX glue)."""
    _, _, h, w = x.shape
    Mh = _bilinear_matrix(h, H, align_corners)
    Mw = _bilinear_matrix(w, W, align_corners)
    return jnp.einsum('Hh,nchw,Ww->ncHW', Mh, x, Mw)


# ---------------------------------------------------------------------------
# M_Decoder forward (Pallas path)
# ---------------------------------------------------------------------------
def m_decoder_forward(params, x_big, x, kernel_size=3, dilation=1):
    k = kernel_size
    dil = dilation
    pad = (dil * k - 1) // 2
    assert 2 * pad == dil * (k - 1), "fused kernel assumes 'same'-size convs"

    N, Cbig, H, W = x_big.shape
    _, Cx, _, _ = x.shape
    Cin = Cbig + Cx
    Cout = params[0]["w"].shape[0]

    # --- glue (plain JAX): upsample + concat, emitted straight into the flat
    #     bf16 kernel layout with a single flat pad (head + tail + 128-round) --
    up = bilinear_upsample(x, H, W)
    cat = jnp.concatenate([x_big, up], axis=1).astype(jnp.bfloat16)   # (N,Cin,H,W)

    Hp, Wp = H + 2 * pad, W + 2 * pad
    Lp = Hp * Wp
    Lpp = _round_up(Lp, 128)                 # lane-dense output width
    head = pad * Wp + pad                    # max |flat tap offset|
    Ltot = _round_up(Lpp + 2 * head, 128)    # source span incl. halos, 128-aligned

    cat_pad = jnp.pad(cat, ((0, 0), (0, 0), (pad, pad), (pad, pad)))
    x_flat = cat_pad.reshape(N, Cin, Lp)
    x_flat = jnp.pad(x_flat, ((0, 0), (0, 0), (head, Ltot - head - Lp)))  # (N,Cin,Ltot)

    # validity mask of the padded plane (1 inside the H x W interior, 0 on the
    # pad ring and on the 128-rounding tail)
    yy = jnp.arange(Hp)[:, None]
    xx = jnp.arange(Wp)[None, :]
    valid = (yy >= pad) & (yy < pad + H) & (xx >= pad) & (xx < pad + W)
    mask = jnp.pad(valid.astype(jnp.float32).reshape(1, Lp),
                   ((0, 0), (0, Lpp - Lp)))

    # im2col weight layout: (Cout, k*k*Cin_layer) with K index = tap*Cin + c
    def im2col_w(w):
        co, ci, kh, kw = w.shape
        return w.transpose(0, 2, 3, 1).reshape(co, kh * kw * ci).astype(jnp.bfloat16)

    w1, w2, w3 = (im2col_w(p["w"]) for p in params)

    # VMEM limit: respect v7x's 64 MiB/TC, use the larger VMEM on v5e/v6e.
    try:
        vmem_cap = pltpu.get_tpu_info().vmem_capacity_bytes
    except Exception:
        vmem_cap = 64 * 1024 * 1024
    vmem_limit = int(min(vmem_cap * 3 // 4, 100 * 1024 * 1024))

    kern = functools.partial(_decode_kernel, k=k, dil=dil, pad=pad,
                             Wp=Wp, Lpp=Lpp, head=head, Ltot=Ltot)

    out_flat = pl.pallas_call(
        kern,
        out_shape=jax.ShapeDtypeStruct((N, Cout, Lpp), jnp.float32),
        grid=(N,),
        in_specs=[
            pl.BlockSpec((None, Cin, Ltot), lambda n: (n, 0, 0)),
            pl.BlockSpec((Cout, k * k * Cin), lambda n: (0, 0)),
            pl.BlockSpec((Cout, k * k * Cout), lambda n: (0, 0)),
            pl.BlockSpec((Cout, k * k * Cout), lambda n: (0, 0)),
            pl.BlockSpec((1, Lpp), lambda n: (0, 0)),
        ],
        out_specs=pl.BlockSpec((None, Cout, Lpp), lambda n: (n, 0, 0)),
        scratch_shapes=[pltpu.VMEM((Cout, Ltot), jnp.bfloat16),
                        pltpu.VMEM((Cout, Ltot), jnp.bfloat16)],
        compiler_params=pltpu.CompilerParams(
            dimension_semantics=("parallel",),          # megacore-shard batch
            vmem_limit_bytes=vmem_limit),
    )(x_flat, w1, w2, w3, mask)

    # drop the 128-rounding tail and the pad ring, back to NCHW
    out = out_flat[:, :, :Lp].reshape(N, Cout, Hp, Wp)[:, :, pad:pad + H, pad:pad + W]
    return out


# ---------------------------------------------------------------------------
# Pure-JAX reference (mirrors the PyTorch forward, f32)
# ---------------------------------------------------------------------------
def m_decoder_reference(params, x_big, x, kernel_size=3, dilation=1):
    pad = (dilation * kernel_size - 1) // 2
    N, _, H, W = x_big.shape
    up = bilinear_upsample(x, H, W)
    y = jnp.concatenate([x_big, up], axis=1)
    for p in params:
        y = lax.conv_general_dilated(
            y, p["w"], window_strides=(1, 1),
            padding=[(pad, pad), (pad, pad)],
            rhs_dilation=(dilation, dilation),
            dimension_numbers=("NCHW", "OIHW", "NCHW"),
            precision=lax.Precision.HIGHEST)
        y = jnp.maximum(y, 0.0)
    return y


# ---------------------------------------------------------------------------
# Params
# ---------------------------------------------------------------------------
def _init_conv(key, out_c, in_c, k):
    bound = 1.0 / (in_c * k * k) ** 0.5          # ~ PyTorch default conv init
    return jax.random.uniform(key, (out_c, in_c, k, k), jnp.float32, -bound, bound)


def init_decoder(key, input_channels, output_channels, kernel_size=3):
    k1, k2, k3 = jax.random.split(key, 3)
    return [
        {"w": _init_conv(k1, output_channels, input_channels, kernel_size)},
        {"w": _init_conv(k2, output_channels, output_channels, kernel_size)},
        {"w": _init_conv(k3, output_channels, output_channels, kernel_size)},
    ]


# ---------------------------------------------------------------------------
if __name__ == "__main__":
    key = jax.random.PRNGKey(0)
    k_big, k_x, k_p = jax.random.split(key, 3)

    # M_Decoder(input_channels=8, output_channels=8); x_big: 4 ch, x: 4 ch at half res.
    N, Cbig, Cx, Cout = 2, 4, 4, 8
    H = W = 16
    x_big = jax.random.normal(k_big, (N, Cbig, H, W), jnp.float32)
    x = jax.random.normal(k_x, (N, Cx, H // 2, W // 2), jnp.float32)

    params = init_decoder(k_p, input_channels=Cbig + Cx, output_channels=Cout)

    fwd = jax.jit(m_decoder_forward)
    out = jax.block_until_ready(fwd(params, x_big, x))

    assert out.shape == (N, Cout, H, W), out.shape
    assert bool(jnp.all(jnp.isfinite(out)))

    ref = jax.block_until_ready(m_decoder_reference(params, x_big, x))
    max_err = float(jnp.max(jnp.abs(out - ref)))
    assert max_err < 5e-2, f"mismatch vs reference: max |err| = {max_err}"

    print("KERNEL_OK")
</pallas_src>

<mosaic_0001>
module attributes {stable_mosaic.version = 11 : i64} {
  func.func private @main(%arg0: i32) attributes {dimension_semantics = [#tpu.dimension_semantics<core_parallel>], iteration_bounds = array<i64: 2>, tpu.core_type = #tpu.core_type<sc_scalar_subcore>, window_params = []} {
    return
  }
}

module attributes {stable_mosaic.version = 11 : i64} {
  func.func private @main(%arg0: i32) attributes {dimension_semantics = [#tpu.dimension_semantics<core_parallel>], iteration_bounds = array<i64: 2>, tpu.core_type = #tpu.core_type<sc_scalar_subcore>, window_params = []} {
    return
  }
}

module attributes {stable_mosaic.version = 11 : i64} {
  func.func @_decode_kernel(%arg0: i32, %arg1: memref<1x8x512xbf16, #tpu.memory_space<vmem>>, %arg2: memref<8x72xbf16, #tpu.memory_space<vmem>>, %arg3: memref<8x72xbf16, #tpu.memory_space<vmem>>, %arg4: memref<8x72xbf16, #tpu.memory_space<vmem>>, %arg5: memref<1x384xf32, #tpu.memory_space<vmem>>, %arg6: memref<1x8x384xf32, #tpu.memory_space<vmem>>, %arg7: memref<8x512xbf16, #tpu.memory_space<vmem>>, %arg8: memref<8x512xbf16, #tpu.memory_space<vmem>>) attributes {dimension_semantics = [#tpu.dimension_semantics<parallel>], iteration_bounds = array<i64: 2>, scalar_prefetch = 0 : i64, scratch_operands = 2 : i64, tpu.core_type = #tpu.core_type<tc>, window_params = [{transform_indices = @transform_0, window_bounds = array<i64: 1, 8, 512>}, {pipeline_mode = #tpu.pipeline_mode<synchronous>, transform_indices = @transform_1, window_bounds = array<i64: 8, 72>}, {pipeline_mode = #tpu.pipeline_mode<synchronous>, transform_indices = @transform_2, window_bounds = array<i64: 8, 72>}, {pipeline_mode = #tpu.pipeline_mode<synchronous>, transform_indices = @transform_3, window_bounds = array<i64: 8, 72>}, {pipeline_mode = #tpu.pipeline_mode<synchronous>, transform_indices = @transform_4, window_bounds = array<i64: 1, 384>}, {transform_indices = @transform_5, window_bounds = array<i64: 1, 8, 384>}]} {
    %c0 = arith.constant 0 : index
    %c0_0 = arith.constant 0 : index
    %0 = vector.load %arg5[%c0, %c0_0] : memref<1x384xf32, #tpu.memory_space<vmem>>, vector<1x384xf32>
    %cst = arith.constant 0.000000e+00 : bf16
    %1 = vector.broadcast %cst : bf16 to vector<8x19xbf16>
    %c0_1 = arith.constant 0 : index
    %c0_2 = arith.constant 0 : index
    %2 = vector.load %arg7[%c0_1, %c0_2] : memref<8x512xbf16, #tpu.memory_space<vmem>>, vector<8x19xbf16>
    tpu.vector_store %arg7[%c0_1, %c0_2], %1 {strides = array<i32>} : memref<8x512xbf16, #tpu.memory_space<vmem>>, vector<8x19xbf16>,
    %cst_3 = arith.constant 0.000000e+00 : bf16
    %3 = vector.broadcast %cst_3 : bf16 to vector<8x109xbf16>
    %c0_4 = arith.constant 0 : index
    %c403 = arith.constant 403 : index
    %4 = vector.load %arg7[%c0_4, %c403] : memref<8x512xbf16, #tpu.memory_space<vmem>>, vector<8x109xbf16>
    tpu.vector_store %arg7[%c0_4, %c403], %3 {strides = array<i32>} : memref<8x512xbf16, #tpu.memory_space<vmem>>, vector<8x109xbf16>,
    %cst_5 = arith.constant 0.000000e+00 : bf16
    %5 = vector.broadcast %cst_5 : bf16 to vector<8x19xbf16>
    %c0_6 = arith.constant 0 : index
    %c0_7 = arith.constant 0 : index
    %6 = vector.load %arg8[%c0_6, %c0_7] : memref<8x512xbf16, #tpu.memory_space<vmem>>, vector<8x19xbf16>
    tpu.vector_store %arg8[%c0_6, %c0_7], %5 {strides = array<i32>} : memref<8x512xbf16, #tpu.memory_space<vmem>>, vector<8x19xbf16>,
    %cst_8 = arith.constant 0.000000e+00 : bf16
    %7 = vector.broadcast %cst_8 : bf16 to vector<8x109xbf16>
    %c0_9 = arith.constant 0 : index
    %c403_10 = arith.constant 403 : index
    %8 = vector.load %arg8[%c0_9, %c403_10] : memref<8x512xbf16, #tpu.memory_space<vmem>>, vector<8x109xbf16>
    tpu.vector_store %arg8[%c0_9, %c403_10], %7 {strides = array<i32>} : memref<8x512xbf16, #tpu.memory_space<vmem>>, vector<8x109xbf16>,
    %c0_11 = arith.constant 0 : index
    %c0_12 = arith.constant 0 : index
    %c0_13 = arith.constant 0 : index
    %9 = vector.load %arg1[%c0_11, %c0_12, %c0_13] : memref<1x8x512xbf16, #tpu.memory_space<vmem>>, vector<1x8x384xbf16>
    %10 = vector.shape_cast %9 : vector<1x8x384xbf16> to vector<8x384xbf16>
    %c0_14 = arith.constant 0 : index
    %c0_15 = arith.constant 0 : index
    %c1 = arith.constant 1 : index
    %11 = vector.load %arg1[%c0_14, %c0_15, %c1] : memref<1x8x512xbf16, #tpu.memory_space<vmem>>, vector<1x8x384xbf16>
    %12 = vector.shape_cast %11 : vector<1x8x384xbf16> to vector<8x384xbf16>
    %c0_16 = arith.constant 0 : index
    %c0_17 = arith.constant 0 : index
    %c2 = arith.constant 2 : index
    %13 = vector.load %arg1[%c0_16, %c0_17, %c2] : memref<1x8x512xbf16, #tpu.memory_space<vmem>>, vector<1x8x384xbf16>
    %14 = vector.shape_cast %13 : vector<1x8x384xbf16> to vector<8x384xbf16>
    %c0_18 = arith.constant 0 : index
    %c0_19 = arith.constant 0 : index
    %c18 = arith.constant 18 : index
    %15 = vector.load %arg1[%c0_18, %c0_19, %c18] : memref<1x8x512xbf16, #tpu.memory_space<vmem>>, vector<1x8x384xbf16>
    %16 = vector.shape_cast %15 : vector<1x8x384xbf16> to vector<8x384xbf16>
    %c0_20 = arith.constant 0 : index
    %c0_21 = arith.constant 0 : index
    %c19 = arith.constant 19 : index
    %17 = vector.load %arg1[%c0_20, %c0_21, %c19] : memref<1x8x512xbf16, #tpu.memory_space<vmem>>, vector<1x8x384xbf16>
    %18 = vector.shape_cast %17 : vector<1x8x384xbf16> to vector<8x384xbf16>
    %c0_22 = arith.constant 0 : index
    %c0_23 = arith.constant 0 : index
    %c20 = arith.constant 20 : index
    %19 = vector.load %arg1[%c0_22, %c0_23, %c20] : memref<1x8x512xbf16, #tpu.memory_space<vmem>>, vector<1x8x384xbf16>
    %20 = vector.shape_cast %19 : vector<1x8x384xbf16> to vector<8x384xbf16>
    %c0_24 = arith.constant 0 : index
    %c0_25 = arith.constant 0 : index
    %c36 = arith.constant 36 : index
    %21 = vector.load %arg1[%c0_24, %c0_25, %c36] : memref<1x8x512xbf16, #tpu.memory_space<vmem>>, vector<1x8x384xbf16>
    %22 = vector.shape_cast %21 : vector<1x8x384xbf16> to vector<8x384xbf16>
    %c0_26 = arith.constant 0 : index
    %c0_27 = arith.constant 0 : index
    %c37 = arith.constant 37 : index
    %23 = vector.load %arg1[%c0_26, %c0_27, %c37] : memref<1x8x512xbf16, #tpu.memory_space<vmem>>, vector<1x8x384xbf16>
    %24 = vector.shape_cast %23 : vector<1x8x384xbf16> to vector<8x384xbf16>
    %c0_28 = arith.constant 0 : index
    %c0_29 = arith.constant 0 : index
    %c38 = arith.constant 38 : index
    %25 = vector.load %arg1[%c0_28, %c0_29, %c38] : memref<1x8x512xbf16, #tpu.memory_space<vmem>>, vector<1x8x384xbf16>
    %26 = vector.shape_cast %25 : vector<1x8x384xbf16> to vector<8x384xbf16>
    %27 = tpu.concatenate %10, %12, %14, %16, %18, %20, %22, %24, %26 in 0 : vector<8x384xbf16>, vector<8x384xbf16>, vector<8x384xbf16>, vector<8x384xbf16>, vector<8x384xbf16>, vector<8x384xbf16>, vector<8x384xbf16>, vector<8x384xbf16>, vector<8x384xbf16> -> vector<72x384xbf16>
    %c0_30 = arith.constant 0 : index
    %c0_31 = arith.constant 0 : index
    %28 = vector.load %arg2[%c0_30, %c0_31] : memref<8x72xbf16, #tpu.memory_space<vmem>>, vector<8x72xbf16>
    %cst_32 = arith.constant dense<0.000000e+00> : vector<8x384xf32>
    %29 = tpu.matmul %28, %27, %cst_32 {dimension_numbers = #tpu.dot_dimension_numbers<[1], [0], [0], [1], [0, 0, 1, 1], [], []>} : vector<8x72xbf16>, vector<72x384xbf16>, vector<8x384xf32> -> vector<8x384xf32>
    %cst_33 = arith.constant 0.000000e+00 : f32
    %30 = vector.broadcast %cst_33 : f32 to vector<8x384xf32>
    %31 = arith.maximumf %29, %30 : vector<8x384xf32>
    %32 = vector.broadcast %0 : vector<1x384xf32> to vector<8x384xf32>
    %33 = arith.mulf %31, %32 : vector<8x384xf32>
    %34 = arith.truncf %33 : vector<8x384xf32> to vector<8x384xbf16>
    %c0_34 = arith.constant 0 : index
    %c19_35 = arith.constant 19 : index
    %35 = vector.load %arg7[%c0_34, %c19_35] : memref<8x512xbf16, #tpu.memory_space<vmem>>, vector<8x384xbf16>
    tpu.vector_store %arg7[%c0_34, %c19_35], %34 {strides = array<i32>} : memref<8x512xbf16, #tpu.memory_space<vmem>>, vector<8x384xbf16>,
    %c0_36 = arith.constant 0 : index
    %c0_37 = arith.constant 0 : index
    %36 = vector.load %arg7[%c0_36, %c0_37] : memref<8x512xbf16, #tpu.memory_space<vmem>>, vector<8x384xbf16>
    %c0_38 = arith.constant 0 : index
    %c1_39 = arith.constant 1 : index
    %37 = vector.load %arg7[%c0_38, %c1_39] : memref<8x512xbf16, #tpu.memory_space<vmem>>, vector<8x384xbf16>
    %c0_40 = arith.constant 0 : index
    %c2_41 = arith.constant 2 : index
    %38 = vector.load %arg7[%c0_40, %c2_41] : memref<8x512xbf16, #tpu.memory_space<vmem>>, vector<8x384xbf16>
    %c0_42 = arith.constant 0 : index
    %c18_43 = arith.constant 18 : index
    %39 = vector.load %arg7[%c0_42, %c18_43] : memref<8x512xbf16, #tpu.memory_space<vmem>>, vector<8x384xbf16>
    %c0_44 = arith.constant 0 : index
    %c19_45 = arith.constant 19 : index
    %40 = vector.load %arg7[%c0_44, %c19_45] : memref<8x512xbf16, #tpu.memory_space<vmem>>, vector<8x384xbf16>
    %c0_46 = arith.constant 0 : index
    %c20_47 = arith.constant 20 : index
    %41 = vector.load %arg7[%c0_46, %c20_47] : memref<8x512xbf16, #tpu.memory_space<vmem>>, vector<8x384xbf16>
    %c0_48 = arith.constant 0 : index
    %c36_49 = arith.constant 36 : index
    %42 = vector.load %arg7[%c0_48, %c36_49] : memref<8x512xbf16, #tpu.memory_space<vmem>>, vector<8x384xbf16>
    %c0_50 = arith.constant 0 : index
    %c37_51 = arith.constant 37 : index
    %43 = vector.load %arg7[%c0_50, %c37_51] : memref<8x512xbf16, #tpu.memory_space<vmem>>, vector<8x384xbf16>
    %c0_52 = arith.constant 0 : index
    %c38_53 = arith.constant 38 : index
    %44 = vector.load %arg7[%c0_52, %c38_53] : memref<8x512xbf16, #tpu.memory_space<vmem>>, vector<8x384xbf16>
    %45 = tpu.concatenate %36, %37, %38, %39, %40, %41, %42, %43, %44 in 0 : vector<8x384xbf16>, vector<8x384xbf16>, vector<8x384xbf16>, vector<8x384xbf16>, vector<8x384xbf16>, vector<8x384xbf16>, vector<8x384xbf16>, vector<8x384xbf16>, vector<8x384xbf16> -> vector<72x384xbf16>
    %c0_54 = arith.constant 0 : index
    %c0_55 = arith.constant 0 : index
    %46 = vector.load %arg3[%c0_54, %c0_55] : memref<8x72xbf16, #tpu.memory_space<vmem>>, vector<8x72xbf16>
    %cst_56 = arith.constant dense<0.000000e+00> : vector<8x384xf32>
    %47 = tpu.matmul %46, %45, %cst_56 {dimension_numbers = #tpu.dot_dimension_numbers<[1], [0], [0], [1], [0, 0, 1, 1], [], []>} : vector<8x72xbf16>, vector<72x384xbf16>, vector<8x384xf32> -> vector<8x384xf32>
    %cst_57 = arith.constant 0.000000e+00 : f32
    %48 = vector.broadcast %cst_57 : f32 to vector<8x384xf32>
    %49 = arith.maximumf %47, %48 : vector<8x384xf32>
    %50 = vector.broadcast %0 : vector<1x384xf32> to vector<8x384xf32>
    %51 = arith.mulf %49, %50 : vector<8x384xf32>
    %52 = arith.truncf %51 : vector<8x384xf32> to vector<8x384xbf16>
    %c0_58 = arith.constant 0 : index
    %c19_59 = arith.constant 19 : index
    %53 = vector.load %arg8[%c0_58, %c19_59] : memref<8x512xbf16, #tpu.memory_space<vmem>>, vector<8x384xbf16>
    tpu.vector_store %arg8[%c0_58, %c19_59], %52 {strides = array<i32>} : memref<8x512xbf16, #tpu.memory_space<vmem>>, vector<8x384xbf16>,
    %c0_60 = arith.constant 0 : index
    %c0_61 = arith.constant 0 : index
    %54 = vector.load %arg8[%c0_60, %c0_61] : memref<8x512xbf16, #tpu.memory_space<vmem>>, vector<8x384xbf16>
    %c0_62 = arith.constant 0 : index
    %c1_63 = arith.constant 1 : index
    %55 = vector.load %arg8[%c0_62, %c1_63] : memref<8x512xbf16, #tpu.memory_space<vmem>>, vector<8x384xbf16>
    %c0_64 = arith.constant 0 : index
    %c2_65 = arith.constant 2 : index
    %56 = vector.load %arg8[%c0_64, %c2_65] : memref<8x512xbf16, #tpu.memory_space<vmem>>, vector<8x384xbf16>
    %c0_66 = arith.constant 0 : index
    %c18_67 = arith.constant 18 : index
    %57 = vector.load %arg8[%c0_66, %c18_67] : memref<8x512xbf16, #tpu.memory_space<vmem>>, vector<8x384xbf16>
    %c0_68 = arith.constant 0 : index
    %c19_69 = arith.constant 19 : index
    %58 = vector.load %arg8[%c0_68, %c19_69] : memref<8x512xbf16, #tpu.memory_space<vmem>>, vector<8x384xbf16>
    %c0_70 = arith.constant 0 : index
    %c20_71 = arith.constant 20 : index
    %59 = vector.load %arg8[%c0_70, %c20_71] : memref<8x512xbf16, #tpu.memory_space<vmem>>, vector<8x384xbf16>
    %c0_72 = arith.constant 0 : index
    %c36_73 = arith.constant 36 : index
    %60 = vector.load %arg8[%c0_72, %c36_73] : memref<8x512xbf16, #tpu.memory_space<vmem>>, vector<8x384xbf16>
    %c0_74 = arith.constant 0 : index
    %c37_75 = arith.constant 37 : index
    %61 = vector.load %arg8[%c0_74, %c37_75] : memref<8x512xbf16, #tpu.memory_space<vmem>>, vector<8x384xbf16>
    %c0_76 = arith.constant 0 : index
    %c38_77 = arith.constant 38 : index
    %62 = vector.load %arg8[%c0_76, %c38_77] : memref<8x512xbf16, #tpu.memory_space<vmem>>, vector<8x384xbf16>
    %63 = tpu.concatenate %54, %55, %56, %57, %58, %59, %60, %61, %62 in 0 : vector<8x384xbf16>, vector<8x384xbf16>, vector<8x384xbf16>, vector<8x384xbf16>, vector<8x384xbf16>, vector<8x384xbf16>, vector<8x384xbf16>, vector<8x384xbf16>, vector<8x384xbf16> -> vector<72x384xbf16>
    %c0_78 = arith.constant 0 : index
    %c0_79 = arith.constant 0 : index
    %64 = vector.load %arg4[%c0_78, %c0_79] : memref<8x72xbf16, #tpu.memory_space<vmem>>, vector<8x72xbf16>
    %cst_80 = arith.constant dense<0.000000e+00> : vector<8x384xf32>
    %65 = tpu.matmul %64, %63, %cst_80 {dimension_numbers = #tpu.dot_dimension_numbers<[1], [0], [0], [1], [0, 0, 1, 1], [], []>} : vector<8x72xbf16>, vector<72x384xbf16>, vector<8x384xf32> -> vector<8x384xf32>
    %cst_81 = arith.constant 0.000000e+00 : f32
    %66 = vector.broadcast %cst_81 : f32 to vector<8x384xf32>
    %67 = arith.maximumf %65, %66 : vector<8x384xf32>
    %68 = vector.broadcast %0 : vector<1x384xf32> to vector<8x384xf32>
    %69 = arith.mulf %67, %68 : vector<8x384xf32>
    %c0_82 = arith.constant 0 : index
    %c0_83 = arith.constant 0 : index
    %c0_84 = arith.constant 0 : index
    %70 = vector.load %arg6[%c0_82, %c0_83, %c0_84] : memref<1x8x384xf32, #tpu.memory_space<vmem>>, vector<1x8x384xf32>
    %71 = vector.shape_cast %70 : vector<1x8x384xf32> to vector<8x384xf32>
    %72 = vector.shape_cast %69 : vector<8x384xf32> to vector<1x8x384xf32>
    tpu.vector_store %arg6[%c0_82, %c0_83, %c0_84], %72 {strides = array<i32>} : memref<1x8x384xf32, #tpu.memory_space<vmem>>, vector<1x8x384xf32>,
    return
  }
  func.func @transform_0(%arg0: i32) -> (i32, i32, i32) {
    %c0_i32 = arith.constant 0 : i32
    %c0_i32_0 = arith.constant 0 : i32
    %c0_i32_1 = arith.constant 0 : i32
    return %arg0, %c0_i32, %c0_i32_0 : i32, i32, i32
  }
  func.func @transform_1(%arg0: i32) -> (i32, i32) {
    %c0_i32 = arith.constant 0 : i32
    %c0_i32_0 = arith.constant 0 : i32
    %c0_i32_1 = arith.constant 0 : i32
    return %c0_i32, %c0_i32_0 : i32, i32
  }
  func.func @transform_2(%arg0: i32) -> (i32, i32) {
    %c0_i32 = arith.constant 0 : i32
    %c0_i32_0 = arith.constant 0 : i32
    %c0_i32_1 = arith.constant 0 : i32
    return %c0_i32, %c0_i32_0 : i32, i32
  }
  func.func @transform_3(%arg0: i32) -> (i32, i32) {
    %c0_i32 = arith.constant 0 : i32
    %c0_i32_0 = arith.constant 0 : i32
    %c0_i32_1 = arith.constant 0 : i32
    return %c0_i32, %c0_i32_0 : i32, i32
  }
  func.func @transform_4(%arg0: i32) -> (i32, i32) {
    %c0_i32 = arith.constant 0 : i32
    %c0_i32_0 = arith.constant 0 : i32
    %c0_i32_1 = arith.constant 0 : i32
    return %c0_i32, %c0_i32_0 : i32, i32
  }
  func.func @transform_5(%arg0: i32) -> (i32, i32, i32) {
    %c0_i32 = arith.constant 0 : i32
    %c0_i32_0 = arith.constant 0 : i32
    %c0_i32_1 = arith.constant 0 : i32
    return %arg0, %c0_i32, %c0_i32_0 : i32, i32, i32
  }
}

</mosaic_0001>

<llo_original>
// kernel: m_decoder_forward.1
$region0: #{m_decoder_forward.1}
  #allocation0 [shape = 'u32[]', space=smem, size = 0x4, offset = 0x4, fixed_abs, tag = 'smem constant byte address 0x4 - core index']
  #allocation1 [shape = 'u32[144,128]{1,0:T(1,128)}', space=vmem, size = 0x12000, scoped, tag = 'internal scratch']
  #allocation2 [shape = 'bf16[8,512]{1,0:T(8,128)(2,1)}', space=vmem, size = 0x2000, scoped, tag = 'scratch operand']
  #allocation3 [shape = 'bf16[8,512]{1,0:T(8,128)(2,1)}', space=vmem, size = 0x2000, scoped, tag = 'scratch operand']
  %s0 = inlined_call_operand.vmem [shape: bf16[2,8,512], index: 0, kind: input, shape index: {}]
  %s1 = inlined_call_operand.vmem [shape: bf16[8,72], index: 1, kind: input, shape index: {}]
  %s2 = inlined_call_operand.vmem [shape: bf16[8,72], index: 2, kind: input, shape index: {}]
  %s3 = inlined_call_operand.vmem [shape: bf16[8,72], index: 3, kind: input, shape index: {}]
  %s4 = inlined_call_operand.vmem [shape: f32[1,384], index: 4, kind: input, shape index: {}]
  %s5 = inlined_call_operand.vmem [shape: f32[2,8,384], index: 5, kind: output, shape index: {}]
  %s6 = sld [smem:[#allocation0]]
  $region53: #{m_decoder_forward.1} parent=0
    _
  %s8 = ssub.s32 1, %s6
  %s9 = scalar_select 0, %s8, %s6
  loop: start=0, step=1, limit=4
  $region2: #{m_decoder_forward.1} parent=0 // loop_pre_header
    _
  $region3: #{m_decoder_forward.1} parent=0 // loop_header
    %s11 = sphi 0, %s15
    %p12 = scmp.ge.s32.totalorder %s11, 4
    %s21 = sphi 0, %s23
    %s24 = sphi 0, %s21
    %s25 = sphi 0, %s24
    %s41 = sphi 0, %s25
    %s45 = sphi 0, %s45
    %s47 = sphi 0, %s45
    %s48 = sphi 0, %s47
    %s62 = sphi 0, %s48
    %s66 = sphi 0, %s66
    %s68 = sphi 0, %s66
    %s69 = sphi 0, %s68
    %s83 = sphi 0, %s69
    %s87 = sphi 0, %s87
    %s89 = sphi 0, %s87
    %s90 = sphi 0, %s89
    %s104 = sphi 0, %s90
    %s108 = sphi 0, %s108
    %s110 = sphi 0, %s108
    %s111 = sphi 0, %s110
    %s125 = sphi 0, %s111
    %s131 = sphi 0, %s133
    %s134 = sphi 0, %s131
    %s135 = sphi 0, %s134
    %s151 = sphi 0, %s135
  $region4: #{m_decoder_forward.1} parent=0 // loop_header_branch
    %14 = sbr.rel (%p12) target = $region8
  $region5: #{m_decoder_forward.1} parent=0 // loop_body
    %s16 = ssub.s32 %s11, 1
    %s17 = ssub.s32 %s11, 2
    %s18 = sadd.s32 %s11, 1
    %s19 = ssub.s32 %s11, %s18
    %p20 = scmp.eq.s32.totalorder %s19, 0
    %s22 = sadd.s32 %s21, 1
    %s23 = scalar_select %p20, %s21, %s22
    %p26 = pneg %p20
    %p27 = scmp.eq.s32.totalorder %s11, 1
    %p28 = por %p26, %p27
    %p29 = scmp.ne.s32.totalorder %s21, %s24
    %p30 = scmp.eq.s32.totalorder %s11, 0
    %p31 = por %p29, %p30
    %p32 = scmp.ne.s32.totalorder %s21, %s24
    %p33 = scmp.eq.s32.totalorder %s16, 1
    %p34 = por %p32, %p33
    %p35 = scmp.ne.s32.totalorder %s24, %s25
    %p36 = scmp.eq.s32.totalorder %s16, 0
    %p37 = por %p35, %p36
    %p38 = scmp.ne.s32.totalorder %s24, %s25
    %p39 = scmp.eq.s32.totalorder %s17, 1
    %p40 = por %p38, %p39
    %p42 = scmp.ne.s32.totalorder %s25, %s41
    %p43 = scmp.eq.s32.totalorder %s17, 0
    %p44 = por %p42, %p43
    %s46 = sadd.s32 %s45, 1
    %p49 = scmp.eq.s32.totalorder %s11, 1
    %p50 = scmp.ne.s32.totalorder %s45, %s47
    %p51 = scmp.eq.s32.totalorder %s11, 0
    %p52 = por %p50, %p51
    %p53 = scmp.ne.s32.totalorder %s45, %s47
    %p54 = scmp.eq.s32.totalorder %s16, 1
    %p55 = por %p53, %p54
    %p56 = scmp.ne.s32.totalorder %s47, %s48
    %p57 = scmp.eq.s32.totalorder %s16, 0
    %p58 = por %p56, %p57
    %p59 = scmp.ne.s32.totalorder %s47, %s48
    %p60 = scmp.eq.s32.totalorder %s17, 1
    %p61 = por %p59, %p60
    %p63 = scmp.ne.s32.totalorder %s48, %s62
    %p64 = scmp.eq.s32.totalorder %s17, 0
    %p65 = por %p63, %p64
    %s67 = sadd.s32 %s66, 1
    %p70 = scmp.eq.s32.totalorder %s11, 1
    %p71 = scmp.ne.s32.totalorder %s66, %s68
    %p72 = scmp.eq.s32.totalorder %s11, 0
    %p73 = por %p71, %p72
    %p74 = scmp.ne.s32.totalorder %s66, %s68
    %p75 = scmp.eq.s32.totalorder %s16, 1
    %p76 = por %p74, %p75
    %p77 = scmp.ne.s32.totalorder %s68, %s69
    %p78 = scmp.eq.s32.totalorder %s16, 0
    %p79 = por %p77, %p78
    %p80 = scmp.ne.s32.totalorder %s68, %s69
    %p81 = scmp.eq.s32.totalorder %s17, 1
    %p82 = por %p80, %p81
    %p84 = scmp.ne.s32.totalorder %s69, %s83
    %p85 = scmp.eq.s32.totalorder %s17, 0
    %p86 = por %p84, %p85
    %s88 = sadd.s32 %s87, 1
    %p91 = scmp.eq.s32.totalorder %s11, 1
    %p92 = scmp.ne.s32.totalorder %s87, %s89
    %p93 = scmp.eq.s32.totalorder %s11, 0
    %p94 = por %p92, %p93
    %p95 = scmp.ne.s32.totalorder %s87, %s89
    %p96 = scmp.eq.s32.totalorder %s16, 1
    %p97 = por %p95, %p96
    %p98 = scmp.ne.s32.totalorder %s89, %s90
    %p99 = scmp.eq.s32.totalorder %s16, 0
    %p100 = por %p98, %p99
    %p101 = scmp.ne.s32.totalorder %s89, %s90
    %p102 = scmp.eq.s32.totalorder %s17, 1
    %p103 = por %p101, %p102
    %p105 = scmp.ne.s32.totalorder %s90, %s104
    %p106 = scmp.eq.s32.totalorder %s17, 0
    %p107 = por %p105, %p106
    %s109 = sadd.s32 %s108, 1
    %p112 = scmp.eq.s32.totalorder %s11, 1
    %p113 = scmp.ne.s32.totalorder %s108, %s110
    %p114 = scmp.eq.s32.totalorder %s11, 0
    %p115 = por %p113, %p114
    %p116 = scmp.ne.s32.totalorder %s108, %s110
    %p117 = scmp.eq.s32.totalorder %s16, 1
    %p118 = por %p116, %p117
    %p119 = scmp.ne.s32.totalorder %s110, %s111
    %p120 = scmp.eq.s32.totalorder %s16, 0
    %p121 = por %p119, %p120
    %p122 = scmp.ne.s32.totalorder %s110, %s111
    %p123 = scmp.eq.s32.totalorder %s17, 1
    %p124 = por %p122, %p123
    %p126 = scmp.ne.s32.totalorder %s111, %s125
    %p127 = scmp.eq.s32.totalorder %s17, 0
    %p128 = por %p126, %p127
    %s129 = ssub.s32 %s11, %s18
    %p130 = scmp.eq.s32.totalorder %s129, 0
    %s132 = sadd.s32 %s131, 1
    %s133 = scalar_select %p130, %s131, %s132
    %p136 = pneg %p130
    %p137 = scmp.eq.s32.totalorder %s11, 1
    %p138 = por %p136, %p137
    %p139 = scmp.ne.s32.totalorder %s131, %s134
    %p140 = scmp.eq.s32.totalorder %s11, 0
    %p141 = por %p139, %p140
    %p142 = scmp.ne.s32.totalorder %s131, %s134
    %p143 = scmp.eq.s32.totalorder %s16, 1
    %p144 = por %p142, %p143
    %p145 = scmp.ne.s32.totalorder %s134, %s135
    %p146 = scmp.eq.s32.totalorder %s16, 0
    %p147 = por %p145, %p146
    %p148 = scmp.ne.s32.totalorder %s134, %s135
    %p149 = scmp.eq.s32.totalorder %s17, 1
    %p150 = por %p148, %p149
    %p152 = scmp.ne.s32.totalorder %s135, %s151
    %p153 = scmp.eq.s32.totalorder %s17, 0
    %p154 = por %p152, %p153
    %p155 = scmp.le.s32.totalorder 1, %s11
    %p156 = scmp.lt.s32.totalorder %s11, 3
    %p157 = pnand %p155, %p156
    %p158 = pneg %p157
    // Predicated region
    $region9: #{m_decoder_forward.1} parent=5 // pred_check
      _
    $region10: #{m_decoder_forward.1} parent=5 // pred_check_branch
      %160 = sbr.rel (%p157) target = $region12
    $region11: #{m_decoder_forward.1} parent=5 // pred_region
      %s161 = ssub.s32 %s11, 1
      // Predicated region
      $region13: #{m_decoder_forward.1} parent=11 // pred_check
        %p162 = pneg %p58
      $region14: #{m_decoder_forward.1} parent=11 // pred_check_branch
        %164 = sbr.rel (%p162) target = $region16
      $region15: #{m_decoder_forward.1} parent=11 // pred_region
        _
      $region16: #{m_decoder_forward.1} parent=11 // pred_fallthru
        _
      // Predicated region
      $region17: #{m_decoder_forward.1} parent=11 // pred_check
        %p165 = pneg %p79
      $region18: #{m_decoder_forward.1} parent=11 // pred_check_branch
        %167 = sbr.rel (%p165) target = $region20
      $region19: #{m_decoder_forward.1} parent=11 // pred_region
        _
      $region20: #{m_decoder_forward.1} parent=11 // pred_fallthru
        _
      // Predicated region
      $region21: #{m_decoder_forward.1} parent=11 // pred_check
        %p168 = pneg %p100
      $region22: #{m_decoder_forward.1} parent=11 // pred_check_branch
        %170 = sbr.rel (%p168) target = $region24
      $region23: #{m_decoder_forward.1} parent=11 // pred_region
        _
      $region24: #{m_decoder_forward.1} parent=11 // pred_fallthru
        _
      // Predicated region
      $region25: #{m_decoder_forward.1} parent=11 // pred_check
        %p171 = pneg %p121
      $region26: #{m_decoder_forward.1} parent=11 // pred_check_branch
        %173 = sbr.rel (%p171) target = $region28
      $region27: #{m_decoder_forward.1} parent=11 // pred_region
        _
      $region28: #{m_decoder_forward.1} parent=11 // pred_fallthru
        _
    $region12: #{m_decoder_forward.1} parent=5 // pred_fallthru
      _
    %p174 = scmp.lt.s32.totalorder %s11, 2
    // Predicated region
    $region29: #{m_decoder_forward.1} parent=5 // pred_check
      %p175 = pneg %p174
    $region30: #{m_decoder_forward.1} parent=5 // pred_check_branch
      %177 = sbr.rel (%p175) target = $region32
    $region31: #{m_decoder_forward.1} parent=5 // pred_region
      // Predicated region
      $region33: #{m_decoder_forward.1} parent=31 // pred_check
        %p178 = pneg %p31
      $region34: #{m_decoder_forward.1} parent=31 // pred_check_branch
        %180 = sbr.rel (%p178) target = $region36
      $region35: #{m_decoder_forward.1} parent=31 // pred_region
        %p181 = scmp.lt.s32.totalorder %s11, 1
        %s182 = scalar_select %p181, %s11, 1
        %s183 = smul.addr %s182, 4
        %s184 = smul.addr %s183, 4
        %s185 = scalar_lea.vmem %s0, %s184
      $region36: #{m_decoder_forward.1} parent=31 // pred_fallthru
        _
    $region32: #{m_decoder_forward.1} parent=5 // pred_fallthru
      _
    %p186 = scmp.le.s32.totalorder 1, %s11
    %p187 = scmp.lt.s32.totalorder %s11, 3
    %p188 = pnand %p186, %p187
    %p189 = pneg %p188
    // Predicated region
    $region37: #{m_decoder_forward.1} parent=5 // pred_check
      _
    $region38: #{m_decoder_forward.1} parent=5 // pred_check_branch
      %191 = sbr.rel (%p188) target = $region40
    $region39: #{m_decoder_forward.1} parent=5 // pred_region
      %s192 = ssub.s32 %s11, 1
      %p193 = scmp.lt.s32.totalorder %s16, 1
      %s194 = scalar_select %p193, %s16, 1
      %s195 = smul.addr %s194, 4
      %s196 = smul.addr %s195, 4
      %s197 = scalar_lea.vmem %s0, %s196
      %p198 = pneg %p37
      %p199 = pneg %p34
      %p200 = pneg %p58
      %p201 = pneg %p55
      %p202 = pneg %p79
      %p203 = pneg %p76
      %p204 = pneg %p100
      %p205 = pneg %p97
      %p206 = pneg %p121
      %p207 = pneg %p118
      %p208 = pneg %p147
      %p209 = pneg %p144
      %p210 = scmp.lt.s32.totalorder %s16, 1
      %s211 = scalar_select %p210, %s16, 1
      %s212 = smul.addr %s211, 3
      %s213 = smul.addr %s212, 8
      %s214 = scalar_lea.vmem %s5, %s213
      %p215 = scmp.lt.s32.totalorder %s16, 1
      %s216 = scalar_select %p215, %s16, 1
      %s217 = smul.addr %s216, 4
      %s218 = smul.addr %s217, 4
      %s219 = scalar_lea.vmem %s0, %s218
      %p220 = scmp.lt.s32.totalorder %s16, 1
      %s221 = scalar_select %p220, %s16, 1
      %s222 = smul.addr %s221, 3
      %s223 = smul.addr %s222, 8
      %s224 = scalar_lea.vmem %s5, %s223
      %v226 = vld [vmem:[%s4] sm:$0x7]
      %vm227 = vcmask 150528
      %228 = vst.msk [vmem:[#allocation2] sm:$0xf] %vm227, 0
      %vm229 = vcmask 1043608
      %230 = vst.msk [vmem:[#allocation2 + $0xc] sm:$0xf] %vm229, 0
      %231 = vst.msk [vmem:[#allocation3] sm:$0xf] %vm227, 0
      %232 = vst.msk [vmem:[#allocation3 + $0xc] sm:$0xf] %vm229, 0
      %v233 = vld [vmem:[%s219] sm:$0xff]
      %v234 = vld [vmem:[%s219 + $0x8] sm:$0xf]
      %v235 = vld [vmem:[%s219] sm:$0xff]
      %v236 = vld [vmem:[%s219 + $0x8] sm:$0xff]
      %v239 = vunpack.c.l.b16 %v233
      %v240 = vunpack.c.h.b16 %v233
      %v241 = vunpack.c.l.b16 %v234
      %v242 = vpack.c.b16 %v239, %v239
      %v243 = vpack.c.b16 %v240, %v240
      %v244 = vpack.c.b16 %v241, %v241
      %v247 = vunpack.c.l.b16 %v235
      %v248 = vunpack.c.h.b16 %v235
      %v249 = vunpack.c.l.b16 %v236
      %v250 = vunpack.c.h.b16 %v236
      %v251 = vpack.c.b16 %v247, %v247
      %v252 = vpack.c.b16 %v248, %v248
      %v253 = vpack.c.b16 %v249, %v249
      %v254 = vpack.c.b16 %v250, %v250
      %255 = vrot.lane.b32.xlu0 %v251, 127
      %v256 = vpop.permute.xlu0 %255
      %257 = vrot.lane.b32.xlu0 %v252, 127
      %v258 = vpop.permute.xlu0 %257
      %259 = vrot.lane.b32.xlu0 %v253, 127
      %v260 = vpop.permute.xlu0 %259
      %261 = vrot.lane.b32.xlu0 %v254, 127
      %v262 = vpop.permute.xlu0 %261
      %vm263 = vcmask 1039360
      %v264 = vsel %vm263, %v256, %v258
      %v265 = vsel %vm263, %v258, %v260
      %v266 = vsel %vm263, %v260, %v262
      %267 = vrot.lane.b32.xlu0 %v251, 126
      %v268 = vpop.permute.xlu0 %267
      %269 = vrot.lane.b32.xlu0 %v252, 126
      %v270 = vpop.permute.xlu0 %269
      %271 = vrot.lane.b32.xlu0 %v253, 126
      %v272 = vpop.permute.xlu0 %271
      %273 = vrot.lane.b32.xlu0 %v254, 126
      %v274 = vpop.permute.xlu0 %273
      %vm275 = vcmask 1031168
      %v276 = vsel %vm275, %v268, %v270
      %v277 = vsel %vm275, %v270, %v272
      %v278 = vsel %vm275, %v272, %v274
      %279 = vrot.lane.b32.xlu0 %v251, 110
      %v280 = vpop.permute.xlu0 %279
      %281 = vrot.lane.b32.xlu0 %v252, 110
      %v282 = vpop.permute.xlu0 %281
      %283 = vrot.lane.b32.xlu0 %v253, 110
      %v284 = vpop.permute.xlu0 %283
      %285 = vrot.lane.b32.xlu0 %v254, 110
      %v286 = vpop.permute.xlu0 %285
      %vm287 = vcmask 900096
      %v288 = vsel %vm287, %v280, %v282
      %v289 = vsel %vm287, %v282, %v284
      %v290 = vsel %vm287, %v284, %v286
      %291 = vrot.lane.b32.xlu0 %v251, 109
      %v292 = vpop.permute.xlu0 %291
      %293 = vrot.lane.b32.xlu0 %v252, 109
      %v294 = vpop.permute.xlu0 %293
      %295 = vrot.lane.b32.xlu0 %v253, 109
      %v296 = vpop.permute.xlu0 %295
      %297 = vrot.lane.b32.xlu0 %v254, 109
      %v298 = vpop.permute.xlu0 %297
      %vm299 = vcmask 891904
      %v300 = vsel %vm299, %v292, %v294
      %v301 = vsel %vm299, %v294, %v296
      %v302 = vsel %vm299, %v296, %v298
      %303 = vrot.lane.b32.xlu0 %v251, 108
      %v304 = vpop.permute.xlu0 %303
      %305 = vrot.lane.b32.xlu0 %v252, 108
      %v306 = vpop.permute.xlu0 %305
      %307 = vrot.lane.b32.xlu0 %v253, 108
      %v308 = vpop.permute.xlu0 %307
      %309 = vrot.lane.b32.xlu0 %v254, 108
      %v310 = vpop.permute.xlu0 %309
      %vm311 = vcmask 883712
      %v312 = vsel %vm311, %v304, %v306
      %v313 = vsel %vm311, %v306, %v308
      %v314 = vsel %vm311, %v308, %v310
      %315 = vrot.lane.b32.xlu0 %v251, 92
      %v316 = vpop.permute.xlu0 %315
      %317 = vrot.lane.b32.xlu0 %v252, 92
      %v318 = vpop.permute.xlu0 %317
      %319 = vrot.lane.b32.xlu0 %v253, 92
      %v320 = vpop.permute.xlu0 %319
      %321 = vrot.lane.b32.xlu0 %v254, 92
      %v322 = vpop.permute.xlu0 %321
      %vm323 = vcmask 752640
      %v324 = vsel %vm323, %v316, %v318
      %v325 = vsel %vm323, %v318, %v320
      %v326 = vsel %vm323, %v320, %v322
      %327 = vrot.lane.b32.xlu0 %v251, 91
      %v328 = vpop.permute.xlu0 %327
      %329 = vrot.lane.b32.xlu0 %v252, 91
      %v330 = vpop.permute.xlu0 %329
      %331 = vrot.lane.b32.xlu0 %v253, 91
      %v332 = vpop.permute.xlu0 %331
      %333 = vrot.lane.b32.xlu0 %v254, 91
      %v334 = vpop.permute.xlu0 %333
      %vm335 = vcmask 744448
      %v336 = vsel %vm335, %v328, %v330
      %v337 = vsel %vm335, %v330, %v332
      %v338 = vsel %vm335, %v332, %v334
      %339 = vrot.lane.b32.xlu0 %v251, 90
      %v340 = vpop.permute.xlu0 %339
      %341 = vrot.lane.b32.xlu0 %v252, 90
      %v342 = vpop.permute.xlu0 %341
      %343 = vrot.lane.b32.xlu0 %v253, 90
      %v344 = vpop.permute.xlu0 %343
      %345 = vrot.lane.b32.xlu0 %v254, 90
      %v346 = vpop.permute.xlu0 %345
      %vm347 = vcmask 736256
      %v348 = vsel %vm347, %v340, %v342
      %v349 = vsel %vm347, %v342, %v344
      %v350 = vsel %vm347, %v344, %v346
      %vm351 = vcmask 1043456
      %v354 = vsel %vm351, %v242, %v264
      %v358 = vsel %vm351, %v243, %v265
      %v362 = vsel %vm351, %v244, %v266
      %v366 = vsel %vm351, %v276, %v288
      %v370 = vsel %vm351, %v277, %v289
      %v374 = vsel %vm351, %v278, %v290
      %v378 = vsel %vm351, %v300, %v312
      %v382 = vsel %vm351, %v301, %v313
      %v386 = vsel %vm351, %v302, %v314
      %v390 = vsel %vm351, %v324, %v336
      %v394 = vsel %vm351, %v325, %v337
      %v398 = vsel %vm351, %v326, %v338
      %v400 = vld [vmem:[%s1] sm:$0xf]
      %vm401 = vcmask 588800
      %v403 = vsel %vm401, %v400, 0
      %v406 = vsel %vm351, %v348, 0
      %v409 = vsel %vm351, %v349, 0
      %v412 = vsel %vm351, %v350, 0
      %414 = vmatprep.subr.bf16.mxu0 %v358
      %415 = vmatpush1.bf16.msra.mxu0 %v354
      %416 = vmatprep.subr.bf16.mxu0 %v370
      %417 = vmatpush1.bf16.msra.mxu0 %v366
      %418 = vmatprep.subr.bf16.mxu0 %v382
      %419 = vmatpush1.bf16.msra.mxu0 %v378
      %420 = vmatprep.subr.bf16.mxu0 %v394
      %421 = vmatpush1.bf16.msra.mxu0 %v390
      %422 = vmatprep.subr.bf16.mxu0 %v409
      %423 = vmatpush1.bf16.msra.mxu0 %v406
      %424 = vmatprep.subr.bf16.mxu0 0
      %425 = vmatpush1.bf16.msra.mxu0 0
      %426 = vmatprep.subr.bf16.mxu0 0
      %427 = vmatpush1.bf16.msra.mxu0 0
      %428 = vmatprep.subr.bf16.mxu0 0
      %429 = vmatpush1.bf16.msra.mxu0 0
      %430 = vmatprep.subr.bf16.mxu0 0
      %431 = vmatpush1.bf16.msra.mxu0 0
      %432 = vmatprep.subr.bf16.mxu0 0
      %433 = vmatpush1.bf16.msra.mxu0 0
      %434 = vmatprep.subr.bf16.mxu0 0
      %435 = vmatpush1.bf16.msra.mxu0 0
      %436 = vmatprep.subr.bf16.mxu0 0
      %437 = vmatpush1.bf16.msra.mxu0 0
      %438 = vmatprep.subr.bf16.mxu0 0
      %439 = vmatpush1.bf16.msra.mxu0 0
      %440 = vmatprep.subr.bf16.mxu0 0
      %441 = vmatpush1.bf16.msra.mxu0 0
      %442 = vmatprep.subr.bf16.mxu0 0
      %443 = vmatpush1.bf16.msra.mxu0 0
      %444 = vmatprep.subr.bf16.mxu0 0
      %445 = vmatpush1.bf16.msra.mxu0 0
      %446 = vmatprep.mubr.bf16.mxu0 0
      %447 = vmatmul.mubr.bf16.gmra.mrb[0].mxu0 %v403
      %v448 = vpop.f32.mrb[0].mxu0
      %v449 = vadd.f32 0.0, %v448
      %v450 = vpop.f32.mrb[0].mxu0
      %v451 = vadd.f32 0.0, %v450
      %v452 = vpop.f32.mrb[0].mxu0
      %v453 = vpop.f32.mrb[0].mxu0
      %454 = vdwg.mxu0
      %455 = vmatprep.subr.bf16.mxu0 0
      %456 = vmatpush1.bf16.msra.mxu0 %v362
      %457 = vmatprep.subr.bf16.mxu0 0
      %458 = vmatpush1.bf16.msra.mxu0 %v374
      %459 = vmatprep.subr.bf16.mxu0 0
      %460 = vmatpush1.bf16.msra.mxu0 %v386
      %461 = vmatprep.subr.bf16.mxu0 0
      %462 = vmatpush1.bf16.msra.mxu0 %v398
      %463 = vmatprep.subr.bf16.mxu0 0
      %464 = vmatpush1.bf16.msra.mxu0 %v412
      %465 = vmatprep.subr.bf16.mxu0 0
      %466 = vmatpush1.bf16.msra.mxu0 0
      %467 = vmatprep.subr.bf16.mxu0 0
      %468 = vmatpush1.bf16.msra.mxu0 0
      %469 = vmatprep.subr.bf16.mxu0 0
      %470 = vmatpush1.bf16.msra.mxu0 0
      %471 = vmatprep.subr.bf16.mxu0 0
      %472 = vmatpush1.bf16.msra.mxu0 0
      %473 = vmatprep.subr.bf16.mxu0 0
      %474 = vmatpush1.bf16.msra.mxu0 0
      %475 = vmatprep.subr.bf16.mxu0 0
      %476 = vmatpush1.bf16.msra.mxu0 0
      %477 = vmatprep.subr.bf16.mxu0 0
      %478 = vmatpush1.bf16.msra.mxu0 0
      %479 = vmatprep.subr.bf16.mxu0 0
      %480 = vmatpush1.bf16.msra.mxu0 0
      %481 = vmatprep.subr.bf16.mxu0 0
      %482 = vmatpush1.bf16.msra.mxu0 0
      %483 = vmatprep.subr.bf16.mxu0 0
      %484 = vmatpush1.bf16.msra.mxu0 0
      %485 = vmatprep.subr.bf16.mxu0 0
      %486 = vmatpush1.bf16.msra.mxu0 0
      %487 = vmatprep.mubr.bf16.mxu0 0
      %488 = vmatmul.mubr.bf16.gmra.mrb[0].mxu0 %v403
      %v489 = vpop.f32.mrb[0].mxu0
      %v490 = vadd.f32 0.0, %v489
      %v491 = vpop.f32.mrb[0].mxu0
      %v492 = vpop.f32.mrb[0].mxu0
      %v493 = vpop.f32.mrb[0].mxu0
      %494 = vdwg.mxu0
      %v495 = vmax.f32 %v449, 0.0
      %v496 = vmax.f32 %v451, 0.0
      %v497 = vmax.f32 %v490, 0.0
      %v499 = vlaneseq
      %v500 = vshrl.u32 %v499, 7
      %v501 = vsub.s32 0, %v500
      %v502 = vrot.slane %v226, %v501
      %v503 = vlaneseq
      %v504 = vshrl.u32 %v503, 7
      %v505 = vsub.s32 1, %v504
      %v506 = vrot.slane %v226, %v505
      %v507 = vlaneseq
      %v508 = vshrl.u32 %v507, 7
      %v509 = vsub.s32 2, %v508
      %v510 = vrot.slane %v226, %v509
      %v514 = vmul.f32 %v495, %v502
      %v515 = vmul.f32 %v496, %v506
      %v516 = vmul.f32 %v497, %v510
      %v517 = vpack.c.bf16 %v514, %v514
      %v518 = vpack.c.bf16 %v515, %v515
      %v519 = vpack.c.bf16 %v516, %v516
      %v523 = vunpack.c.l.b16 %v517
      %v524 = vunpack.c.l.b16 %v518
      %v525 = vunpack.c.l.b16 %v519
      %v526 = vpack.c.b16 %v524, %v523
      %v527 = vpack.c.b16 %v525, %v525
      %528 = vrot.lane.b32.xlu0 %v526, 19
      %v529 = vpop.permute.xlu0 %528
      %530 = vrot.lane.b32.xlu0 %v527, 19
      %v531 = vpop.permute.xlu0 %530
      %v532 = vrot.slane %v529, 4
      %v533 = vrot.slane %v531, 4
      %vm534 = vcmask 154624
      %v535 = vsel %vm534, %v532, %v529
      %vm536 = vcmask 1043456
      %v537 = vsel %vm536, %v532, %v533
      %v538 = vsel %vm534, %v537, %v531
      %vm541 = vcmask 1047556
      %vm542 = vmor %vm541, %vm229
      %543 = vst.msk [vmem:[#allocation2] sm:$0xff] %vm542, %v535
      %vm544 = vcmask 154628
      %vm545 = vmor %vm544, %vm351
      %546 = vst.msk [vmem:[#allocation2 + $0x8] sm:$0xff] %vm545, %v538
      %v547 = vld [vmem:[#allocation2] sm:$0xff]
      %v548 = vld [vmem:[#allocation2 + $0x8] sm:$0xf]
      %v549 = vld [vmem:[#allocation2] sm:$0xff]
      %v550 = vld [vmem:[#allocation2 + $0x8] sm:$0xff]
      %v553 = vunpack.c.l.b16 %v547
      %v554 = vunpack.c.h.b16 %v547
      %v555 = vunpack.c.l.b16 %v548
      %v556 = vpack.c.b16 %v553, %v553
      %v557 = vpack.c.b16 %v554, %v554
      %v558 = vpack.c.b16 %v555, %v555
      %v561 = vunpack.c.l.b16 %v549
      %v562 = vunpack.c.h.b16 %v549
      %v563 = vunpack.c.l.b16 %v550
      %v564 = vunpack.c.h.b16 %v550
      %v565 = vpack.c.b16 %v561, %v561
      %v566 = vpack.c.b16 %v562, %v562
      %v567 = vpack.c.b16 %v563, %v563
      %v568 = vpack.c.b16 %v564, %v564
      %569 = vrot.lane.b32.xlu0 %v565, 127
      %v570 = vpop.permute.xlu0 %569
      %571 = vrot.lane.b32.xlu0 %v566, 127
      %v572 = vpop.permute.xlu0 %571
      %573 = vrot.lane.b32.xlu0 %v567, 127
      %v574 = vpop.permute.xlu0 %573
      %575 = vrot.lane.b32.xlu0 %v568, 127
      %v576 = vpop.permute.xlu0 %575
      %v577 = vsel %vm263, %v570, %v572
      %v578 = vsel %vm263, %v572, %v574
      %v579 = vsel %vm263, %v574, %v576
      %580 = vrot.lane.b32.xlu0 %v565, 126
      %v581 = vpop.permute.xlu0 %580
      %582 = vrot.lane.b32.xlu0 %v566, 126
      %v583 = vpop.permute.xlu0 %582
      %584 = vrot.lane.b32.xlu0 %v567, 126
      %v585 = vpop.permute.xlu0 %584
      %586 = vrot.lane.b32.xlu0 %v568, 126
      %v587 = vpop.permute.xlu0 %586
      %v588 = vsel %vm275, %v581, %v583
      %v589 = vsel %vm275, %v583, %v585
      %v590 = vsel %vm275, %v585, %v587
      %591 = vrot.lane.b32.xlu0 %v565, 110
      %v592 = vpop.permute.xlu0 %591
      %593 = vrot.lane.b32.xlu0 %v566, 110
      %v594 = vpop.permute.xlu0 %593
      %595 = vrot.lane.b32.xlu0 %v567, 110
      %v596 = vpop.permute.xlu0 %595
      %597 = vrot.lane.b32.xlu0 %v568, 110
      %v598 = vpop.permute.xlu0 %597
      %v599 = vsel %vm287, %v592, %v594
      %v600 = vsel %vm287, %v594, %v596
      %v601 = vsel %vm287, %v596, %v598
      %602 = vrot.lane.b32.xlu0 %v565, 109
      %v603 = vpop.permute.xlu0 %602
      %604 = vrot.lane.b32.xlu0 %v566, 109
      %v605 = vpop.permute.xlu0 %604
      %606 = vrot.lane.b32.xlu0 %v567, 109
      %v607 = vpop.permute.xlu0 %606
      %608 = vrot.lane.b32.xlu0 %v568, 109
      %v609 = vpop.permute.xlu0 %608
      %v610 = vsel %vm299, %v603, %v605
      %v611 = vsel %vm299, %v605, %v607
      %v612 = vsel %vm299, %v607, %v609
      %613 = vrot.lane.b32.xlu0 %v565, 108
      %v614 = vpop.permute.xlu0 %613
      %615 = vrot.lane.b32.xlu0 %v566, 108
      %v616 = vpop.permute.xlu0 %615
      %617 = vrot.lane.b32.xlu0 %v567, 108
      %v618 = vpop.permute.xlu0 %617
      %619 = vrot.lane.b32.xlu0 %v568, 108
      %v620 = vpop.permute.xlu0 %619
      %v621 = vsel %vm311, %v614, %v616
      %v622 = vsel %vm311, %v616, %v618
      %v623 = vsel %vm311, %v618, %v620
      %624 = vrot.lane.b32.xlu0 %v565, 92
      %v625 = vpop.permute.xlu0 %624
      %626 = vrot.lane.b32.xlu0 %v566, 92
      %v627 = vpop.permute.xlu0 %626
      %628 = vrot.lane.b32.xlu0 %v567, 92
      %v629 = vpop.permute.xlu0 %628
      %630 = vrot.lane.b32.xlu0 %v568, 92
      %v631 = vpop.permute.xlu0 %630
      %v632 = vsel %vm323, %v625, %v627
      %v633 = vsel %vm323, %v627, %v629
      %v634 = vsel %vm323, %v629, %v631
      %635 = vrot.lane.b32.xlu0 %v565, 91
      %v636 = vpop.permute.xlu0 %635
      %637 = vrot.lane.b32.xlu0 %v566, 91
      %v638 = vpop.permute.xlu0 %637
      %639 = vrot.lane.b32.xlu0 %v567, 91
      %v640 = vpop.permute.xlu0 %639
      %641 = vrot.lane.b32.xlu0 %v568, 91
      %v642 = vpop.permute.xlu0 %641
      %v643 = vsel %vm335, %v636, %v638
      %v644 = vsel %vm335, %v638, %v640
      %v645 = vsel %vm335, %v640, %v642
      %646 = vrot.lane.b32.xlu0 %v565, 90
      %v647 = vpop.permute.xlu0 %646
      %648 = vrot.lane.b32.xlu0 %v566, 90
      %v649 = vpop.permute.xlu0 %648
      %650 = vrot.lane.b32.xlu0 %v567, 90
      %v651 = vpop.permute.xlu0 %650
      %652 = vrot.lane.b32.xlu0 %v568, 90
      %v653 = vpop.permute.xlu0 %652
      %v654 = vsel %vm347, %v647, %v649
      %v655 = vsel %vm347, %v649, %v651
      %v656 = vsel %vm347, %v651, %v653
      %v659 = vsel %vm351, %v556, %v577
      %v663 = vsel %vm351, %v557, %v578
      %v667 = vsel %vm351, %v558, %v579
      %v671 = vsel %vm351, %v588, %v599
      %v675 = vsel %vm351, %v589, %v600
      %v679 = vsel %vm351, %v590, %v601
      %v683 = vsel %vm351, %v610, %v621
      %v687 = vsel %vm351, %v611, %v622
      %v691 = vsel %vm351, %v612, %v623
      %v695 = vsel %vm351, %v632, %v643
      %v699 = vsel %vm351, %v633, %v644
      %v703 = vsel %vm351, %v634, %v645
      %v705 = vld [vmem:[%s2] sm:$0xf]
      %v707 = vsel %vm401, %v705, 0
      %v710 = vsel %vm351, %v654, 0
      %v713 = vsel %vm351, %v655, 0
      %v716 = vsel %vm351, %v656, 0
      %718 = vmatprep.subr.bf16.mxu0 %v663
      %719 = vmatpush1.bf16.msra.mxu0 %v659
      %720 = vmatprep.subr.bf16.mxu0 %v675
      %721 = vmatpush1.bf16.msra.mxu0 %v671
      %722 = vmatprep.subr.bf16.mxu0 %v687
      %723 = vmatpush1.bf16.msra.mxu0 %v683
      %724 = vmatprep.subr.bf16.mxu0 %v699
      %725 = vmatpush1.bf16.msra.mxu0 %v695
      %726 = vmatprep.subr.bf16.mxu0 %v713
      %727 = vmatpush1.bf16.msra.mxu0 %v710
      %728 = vmatprep.subr.bf16.mxu0 0
      %729 = vmatpush1.bf16.msra.mxu0 0
      %730 = vmatprep.subr.bf16.mxu0 0
      %731 = vmatpush1.bf16.msra.mxu0 0
      %732 = vmatprep.subr.bf16.mxu0 0
      %733 = vmatpush1.bf16.msra.mxu0 0
      %734 = vmatprep.subr.bf16.mxu0 0
      %735 = vmatpush1.bf16.msra.mxu0 0
      %736 = vmatprep.subr.bf16.mxu0 0
      %737 = vmatpush1.bf16.msra.mxu0 0
      %738 = vmatprep.subr.bf16.mxu0 0
      %739 = vmatpush1.bf16.msra.mxu0 0
      %740 = vmatprep.subr.bf16.mxu0 0
      %741 = vmatpush1.bf16.msra.mxu0 0
      %742 = vmatprep.subr.bf16.mxu0 0
      %743 = vmatpush1.bf16.msra.mxu0 0
      %744 = vmatprep.subr.bf16.mxu0 0
      %745 = vmatpush1.bf16.msra.mxu0 0
      %746 = vmatprep.subr.bf16.mxu0 0
      %747 = vmatpush1.bf16.msra.mxu0 0
      %748 = vmatprep.subr.bf16.mxu0 0
      %749 = vmatpush1.bf16.msra.mxu0 0
      %750 = vmatprep.mubr.bf16.mxu0 0
      %751 = vmatmul.mubr.bf16.gmra.mrb[0].mxu0 %v707
      %v752 = vpop.f32.mrb[0].mxu0
      %v753 = vadd.f32 0.0, %v752
      %v754 = vpop.f32.mrb[0].mxu0
      %v755 = vadd.f32 0.0, %v754
      %v756 = vpop.f32.mrb[0].mxu0
      %v757 = vpop.f32.mrb[0].mxu0
      %758 = vdwg.mxu0
      %759 = vmatprep.subr.bf16.mxu0 0
      %760 = vmatpush1.bf16.msra.mxu0 %v667
      %761 = vmatprep.subr.bf16.mxu0 0
      %762 = vmatpush1.bf16.msra.mxu0 %v679
      %763 = vmatprep.subr.bf16.mxu0 0
      %764 = vmatpush1.bf16.msra.mxu0 %v691
      %765 = vmatprep.subr.bf16.mxu0 0
      %766 = vmatpush1.bf16.msra.mxu0 %v703
      %767 = vmatprep.subr.bf16.mxu0 0
      %768 = vmatpush1.bf16.msra.mxu0 %v716
      %769 = vmatprep.subr.bf16.mxu0 0
      %770 = vmatpush1.bf16.msra.mxu0 0
      %771 = vmatprep.subr.bf16.mxu0 0
      %772 = vmatpush1.bf16.msra.mxu0 0
      %773 = vmatprep.subr.bf16.mxu0 0
      %774 = vmatpush1.bf16.msra.mxu0 0
      %775 = vmatprep.subr.bf16.mxu0 0
      %776 = vmatpush1.bf16.msra.mxu0 0
      %777 = vmatprep.subr.bf16.mxu0 0
      %778 = vmatpush1.bf16.msra.mxu0 0
      %779 = vmatprep.subr.bf16.mxu0 0
      %780 = vmatpush1.bf16.msra.mxu0 0
      %781 = vmatprep.subr.bf16.mxu0 0
      %782 = vmatpush1.bf16.msra.mxu0 0
      %783 = vmatprep.subr.bf16.mxu0 0
      %784 = vmatpush1.bf16.msra.mxu0 0
      %785 = vmatprep.subr.bf16.mxu0 0
      %786 = vmatpush1.bf16.msra.mxu0 0
      %787 = vmatprep.subr.bf16.mxu0 0
      %788 = vmatpush1.bf16.msra.mxu0 0
      %789 = vmatprep.subr.bf16.mxu0 0
      %790 = vmatpush1.bf16.msra.mxu0 0
      %791 = vmatprep.mubr.bf16.mxu0 0
      %792 = vmatmul.mubr.bf16.gmra.mrb[0].mxu0 %v707
      %v793 = vpop.f32.mrb[0].mxu0
      %v794 = vadd.f32 0.0, %v793
      %v795 = vpop.f32.mrb[0].mxu0
      %v796 = vpop.f32.mrb[0].mxu0
      %v797 = vpop.f32.mrb[0].mxu0
      %798 = vdwg.mxu0
      %v799 = vmax.f32 %v753, 0.0
      %v800 = vmax.f32 %v755, 0.0
      %v801 = vmax.f32 %v794, 0.0
      %v802 = vmul.f32 %v799, %v502
      %v803 = vmul.f32 %v800, %v506
      %v804 = vmul.f32 %v801, %v510
      %v805 = vpack.c.bf16 %v802, %v802
      %v806 = vpack.c.bf16 %v803, %v803
      %v807 = vpack.c.bf16 %v804, %v804
      %v811 = vunpack.c.l.b16 %v805
      %v812 = vunpack.c.l.b16 %v806
      %v813 = vunpack.c.l.b16 %v807
      %v814 = vpack.c.b16 %v812, %v811
      %v815 = vpack.c.b16 %v813, %v813
      %816 = vrot.lane.b32.xlu0 %v814, 19
      %v817 = vpop.permute.xlu0 %816
      %818 = vrot.lane.b32.xlu0 %v815, 19
      %v819 = vpop.permute.xlu0 %818
      %v820 = vrot.slane %v817, 4
      %v821 = vrot.slane %v819, 4
      %v822 = vsel %vm534, %v820, %v817
      %v823 = vsel %vm536, %v820, %v821
      %v824 = vsel %vm534, %v823, %v819
      %827 = vst.msk [vmem:[#allocation3] sm:$0xff] %vm542, %v822
      %828 = vst.msk [vmem:[#allocation3 + $0x8] sm:$0xff] %vm545, %v824
      %v829 = vld [vmem:[#allocation3] sm:$0xff]
      %v830 = vld [vmem:[#allocation3 + $0x8] sm:$0xf]
      %v831 = vld [vmem:[#allocation3] sm:$0xff]
      %v832 = vld [vmem:[#allocation3 + $0x8] sm:$0xff]
      %v835 = vunpack.c.l.b16 %v829
      %v836 = vunpack.c.h.b16 %v829
      %v837 = vunpack.c.l.b16 %v830
      %v838 = vpack.c.b16 %v835, %v835
      %v839 = vpack.c.b16 %v836, %v836
      %v840 = vpack.c.b16 %v837, %v837
      %v843 = vunpack.c.l.b16 %v831
      %v844 = vunpack.c.h.b16 %v831
      %v845 = vunpack.c.l.b16 %v832
      %v846 = vunpack.c.h.b16 %v832
      %v847 = vpack.c.b16 %v843, %v843
      %v848 = vpack.c.b16 %v844, %v844
      %v849 = vpack.c.b16 %v845, %v845
      %v850 = vpack.c.b16 %v846, %v846
      %851 = vrot.lane.b32.xlu0 %v847, 127
      %v852 = vpop.permute.xlu0 %851
      %853 = vrot.lane.b32.xlu0 %v848, 127
      %v854 = vpop.permute.xlu0 %853
      %855 = vrot.lane.b32.xlu0 %v849, 127
      %v856 = vpop.permute.xlu0 %855
      %857 = vrot.lane.b32.xlu0 %v850, 127
      %v858 = vpop.permute.xlu0 %857
      %v859 = vsel %vm263, %v852, %v854
      %v860 = vsel %vm263, %v854, %v856
      %v861 = vsel %vm263, %v856, %v858
      %862 = vrot.lane.b32.xlu0 %v847, 126
      %v863 = vpop.permute.xlu0 %862
      %864 = vrot.lane.b32.xlu0 %v848, 126
      %v865 = vpop.permute.xlu0 %864
      %866 = vrot.lane.b32.xlu0 %v849, 126
      %v867 = vpop.permute.xlu0 %866
      %868 = vrot.lane.b32.xlu0 %v850, 126
      %v869 = vpop.permute.xlu0 %868
      %v870 = vsel %vm275, %v863, %v865
      %v871 = vsel %vm275, %v865, %v867
      %v872 = vsel %vm275, %v867, %v869
      %873 = vrot.lane.b32.xlu0 %v847, 110
      %v874 = vpop.permute.xlu0 %873
      %875 = vrot.lane.b32.xlu0 %v848, 110
      %v876 = vpop.permute.xlu0 %875
      %877 = vrot.lane.b32.xlu0 %v849, 110
      %v878 = vpop.permute.xlu0 %877
      %879 = vrot.lane.b32.xlu0 %v850, 110
      %v880 = vpop.permute.xlu0 %879
      %v881 = vsel %vm287, %v874, %v876
      %v882 = vsel %vm287, %v876, %v878
      %v883 = vsel %vm287, %v878, %v880
      %884 = vrot.lane.b32.xlu0 %v847, 109
      %v885 = vpop.permute.xlu0 %884
      %886 = vrot.lane.b32.xlu0 %v848, 109
      %v887 = vpop.permute.xlu0 %886
      %888 = vrot.lane.b32.xlu0 %v849, 109
      %v889 = vpop.permute.xlu0 %888
      %890 = vrot.lane.b32.xlu0 %v850, 109
      %v891 = vpop.permute.xlu0 %890
      %v892 = vsel %vm299, %v885, %v887
      %v893 = vsel %vm299, %v887, %v889
      %v894 = vsel %vm299, %v889, %v891
      %895 = vrot.lane.b32.xlu0 %v847, 108
      %v896 = vpop.permute.xlu0 %895
      %897 = vrot.lane.b32.xlu0 %v848, 108
      %v898 = vpop.permute.xlu0 %897
      %899 = vrot.lane.b32.xlu0 %v849, 108
      %v900 = vpop.permute.xlu0 %899
      %901 = vrot.lane.b32.xlu0 %v850, 108
      %v902 = vpop.permute.xlu0 %901
      %v903 = vsel %vm311, %v896, %v898
      %v904 = vsel %vm311, %v898, %v900
      %v905 = vsel %vm311, %v900, %v902
      %906 = vrot.lane.b32.xlu0 %v847, 92
      %v907 = vpop.permute.xlu0 %906
      %908 = vrot.lane.b32.xlu0 %v848, 92
      %v909 = vpop.permute.xlu0 %908
      %910 = vrot.lane.b32.xlu0 %v849, 92
      %v911 = vpop.permute.xlu0 %910
      %912 = vrot.lane.b32.xlu0 %v850, 92
      %v913 = vpop.permute.xlu0 %912
      %v914 = vsel %vm323, %v907, %v909
      %v915 = vsel %vm323, %v909, %v911
      %v916 = vsel %vm323, %v911, %v913
      %917 = vrot.lane.b32.xlu0 %v847, 91
      %v918 = vpop.permute.xlu0 %917
      %919 = vrot.lane.b32.xlu0 %v848, 91
      %v920 = vpop.permute.xlu0 %919
      %921 = vrot.lane.b32.xlu0 %v849, 91
      %v922 = vpop.permute.xlu0 %921
      %923 = vrot.lane.b32.xlu0 %v850, 91
      %v924 = vpop.permute.xlu0 %923
      %v925 = vsel %vm335, %v918, %v920
      %v926 = vsel %vm335, %v920, %v922
      %v927 = vsel %vm335, %v922, %v924
      %928 = vrot.lane.b32.xlu0 %v847, 90
      %v929 = vpop.permute.xlu0 %928
      %930 = vrot.lane.b32.xlu0 %v848, 90
      %v931 = vpop.permute.xlu0 %930
      %932 = vrot.lane.b32.xlu0 %v849, 90
      %v933 = vpop.permute.xlu0 %932
      %934 = vrot.lane.b32.xlu0 %v850, 90
      %v935 = vpop.permute.xlu0 %934
      %v936 = vsel %vm347, %v929, %v931
      %v937 = vsel %vm347, %v931, %v933
      %v938 = vsel %vm347, %v933, %v935
      %v941 = vsel %vm351, %v838, %v859
      %v945 = vsel %vm351, %v839, %v860
      %v949 = vsel %vm351, %v840, %v861
      %v953 = vsel %vm351, %v870, %v881
      %v957 = vsel %vm351, %v871, %v882
      %v961 = vsel %vm351, %v872, %v883
      %v965 = vsel %vm351, %v892, %v903
      %v969 = vsel %vm351, %v893, %v904
      %v973 = vsel %vm351, %v894, %v905
      %v977 = vsel %vm351, %v914, %v925
      %v981 = vsel %vm351, %v915, %v926
      %v985 = vsel %vm351, %v916, %v927
      %v987 = vld [vmem:[%s3] sm:$0xf]
      %v989 = vsel %vm401, %v987, 0
      %v992 = vsel %vm351, %v936, 0
      %v995 = vsel %vm351, %v937, 0
      %v998 = vsel %vm351, %v938, 0
      %1000 = vmatprep.subr.bf16.mxu0 %v945
      %1001 = vmatpush1.bf16.msra.mxu0 %v941
      %1002 = vmatprep.subr.bf16.mxu0 %v957
      %1003 = vmatpush1.bf16.msra.mxu0 %v953
      %1004 = vmatprep.subr.bf16.mxu0 %v969
      %1005 = vmatpush1.bf16.msra.mxu0 %v965
      %1006 = vmatprep.subr.bf16.mxu0 %v981
      %1007 = vmatpush1.bf16.msra.mxu0 %v977
      %1008 = vmatprep.subr.bf16.mxu0 %v995
      %1009 = vmatpush1.bf16.msra.mxu0 %v992
      %1010 = vmatprep.subr.bf16.mxu0 0
      %1011 = vmatpush1.bf16.msra.mxu0 0
      %1012 = vmatprep.subr.bf16.mxu0 0
      %1013 = vmatpush1.bf16.msra.mxu0 0
      %1014 = vmatprep.subr.bf16.mxu0 0
      %1015 = vmatpush1.bf16.msra.mxu0 0
      %1016 = vmatprep.subr.bf16.mxu0 0
      %1017 = vmatpush1.bf16.msra.mxu0 0
      %1018 = vmatprep.subr.bf16.mxu0 0
      %1019 = vmatpush1.bf16.msra.mxu0 0
      %1020 = vmatprep.subr.bf16.mxu0 0
      %1021 = vmatpush1.bf16.msra.mxu0 0
      %1022 = vmatprep.subr.bf16.mxu0 0
      %1023 = vmatpush1.bf16.msra.mxu0 0
      %1024 = vmatprep.subr.bf16.mxu0 0
      %1025 = vmatpush1.bf16.msra.mxu0 0
      %1026 = vmatprep.subr.bf16.mxu0 0
      %1027 = vmatpush1.bf16.msra.mxu0 0
      %1028 = vmatprep.subr.bf16.mxu0 0
      %1029 = vmatpush1.bf16.msra.mxu0 0
      %1030 = vmatprep.subr.bf16.mxu0 0
      %1031 = vmatpush1.bf16.msra.mxu0 0
      %1032 = vmatprep.mubr.bf16.mxu0 0
      %1033 = vmatmul.mubr.bf16.gmra.mrb[0].mxu0 %v989
      %v1034 = vpop.f32.mrb[0].mxu0
      %v1035 = vadd.f32 0.0, %v1034
      %v1036 = vpop.f32.mrb[0].mxu0
      %v1037 = vadd.f32 0.0, %v1036
      %v1038 = vpop.f32.mrb[0].mxu0
      %v1039 = vpop.f32.mrb[0].mxu0
      %1040 = vdwg.mxu0
      %1041 = vmatprep.subr.bf16.mxu0 0
      %1042 = vmatpush1.bf16.msra.mxu0 %v949
      %1043 = vmatprep.subr.bf16.mxu0 0
      %1044 = vmatpush1.bf16.msra.mxu0 %v961
      %1045 = vmatprep.subr.bf16.mxu0 0
      %1046 = vmatpush1.bf16.msra.mxu0 %v973
      %1047 = vmatprep.subr.bf16.mxu0 0
      %1048 = vmatpush1.bf16.msra.mxu0 %v985
      %1049 = vmatprep.subr.bf16.mxu0 0
      %1050 = vmatpush1.bf16.msra.mxu0 %v998
      %1051 = vmatprep.subr.bf16.mxu0 0
      %1052 = vmatpush1.bf16.msra.mxu0 0
      %1053 = vmatprep.subr.bf16.mxu0 0
      %1054 = vmatpush1.bf16.msra.mxu0 0
      %1055 = vmatprep.subr.bf16.mxu0 0
      %1056 = vmatpush1.bf16.msra.mxu0 0
      %1057 = vmatprep.subr.bf16.mxu0 0
      %1058 = vmatpush1.bf16.msra.mxu0 0
      %1059 = vmatprep.subr.bf16.mxu0 0
      %1060 = vmatpush1.bf16.msra.mxu0 0
      %1061 = vmatprep.subr.bf16.mxu0 0
      %1062 = vmatpush1.bf16.msra.mxu0 0
      %1063 = vmatprep.subr.bf16.mxu0 0
      %1064 = vmatpush1.bf16.msra.mxu0 0
      %1065 = vmatprep.subr.bf16.mxu0 0
      %1066 = vmatpush1.bf16.msra.mxu0 0
      %1067 = vmatprep.subr.bf16.mxu0 0
      %1068 = vmatpush1.bf16.msra.mxu0 0
      %1069 = vmatprep.subr.bf16.mxu0 0
      %1070 = vmatpush1.bf16.msra.mxu0 0
      %1071 = vmatprep.subr.bf16.mxu0 0
      %1072 = vmatpush1.bf16.msra.mxu0 0
      %1073 = vmatprep.mubr.bf16.mxu0 0
      %1074 = vmatmul.mubr.bf16.gmra.mrb[0].mxu0 %v989
      %v1075 = vpop.f32.mrb[0].mxu0
      %v1076 = vadd.f32 0.0, %v1075
      %v1077 = vpop.f32.mrb[0].mxu0
      %v1078 = vpop.f32.mrb[0].mxu0
      %v1079 = vpop.f32.mrb[0].mxu0
      %1080 = vdwg.mxu0
      %v1081 = vmax.f32 %v1035, 0.0
      %v1082 = vmax.f32 %v1037, 0.0
      %v1083 = vmax.f32 %v1076, 0.0
      %v1084 = vmul.f32 %v1081, %v502
      %v1085 = vmul.f32 %v1082, %v506
      %v1086 = vmul.f32 %v1083, %v510
      %1087 = vst [vmem:[%s224] sm:$0xff] %v1084
      %1088 = vst [vmem:[%s224 + $0x8] sm:$0xff] %v1085
      %1089 = vst [vmem:[%s224 + $0x10] sm:$0xff] %v1086
      %p1090 = scmp.lt.s32.totalorder %s16, 1
      %s1091 = scalar_select %p1090, %s16, 1
      %s1092 = smul.addr %s1091, 3
      %s1093 = smul.addr %s1092, 8
      %s1094 = scalar_lea.vmem %s5, %s1093
      // Predicated region
      $region41: #{m_decoder_forward.1} parent=39 // pred_check
        %p1095 = pneg %p144
      $region42: #{m_decoder_forward.1} parent=39 // pred_check_branch
        %1097 = sbr.rel (%p1095) target = $region44
      $region43: #{m_decoder_forward.1} parent=39 // pred_region
        _
      $region44: #{m_decoder_forward.1} parent=39 // pred_fallthru
        _
    $region40: #{m_decoder_forward.1} parent=5 // pred_fallthru
      _
    %p1098 = scmp.le.s32.totalorder 2, %s11
    // Predicated region
    $region45: #{m_decoder_forward.1} parent=5 // pred_check
      %p1099 = pneg %p1098
    $region46: #{m_decoder_forward.1} parent=5 // pred_check_branch
      %1101 = sbr.rel (%p1099) target = $region48
    $region47: #{m_decoder_forward.1} parent=5 // pred_region
      %s1102 = ssub.s32 %s11, 2
      // Predicated region
      $region49: #{m_decoder_forward.1} parent=47 // pred_check
        %p1103 = pneg %p150
      $region50: #{m_decoder_forward.1} parent=47 // pred_check_branch
        %1105 = sbr.rel (%p1103) target = $region52
      $region51: #{m_decoder_forward.1} parent=47 // pred_region
        %p1106 = scmp.lt.s32.totalorder %s17, 1
        %s1107 = scalar_select %p1106, %s17, 1
        %s1108 = smul.addr %s1107, 3
        %s1109 = smul.addr %s1108, 8
        %s1110 = scalar_lea.vmem %s5, %s1109
      $region52: #{m_decoder_forward.1} parent=47 // pred_fallthru
        _
    $region48: #{m_decoder_forward.1} parent=5 // pred_fallthru
      _
  $region6: #{m_decoder_forward.1} parent=0 // loop_footer
    %s15 = sadd.s32 1, %s11
  $region7: #{m_decoder_forward.1} parent=0 // loop_footer_branch
    %10 = sbr.rel target = $region3
  $region8: #{m_decoder_forward.1} parent=0 // loop_exit
    _

</llo_original>
